<compile_context>
chip_gen: v7x
topology: tpu7x:2x2x1
jax: 0.10.0
libtpu: 0.0.40
codegen_flags: <defaults>
</compile_context>

<pallas_src>
import jax
import jax.numpy as jnp
from jax.experimental import pallas as pl
from jax.experimental.pallas import tpu as pltpu


def _conv1x1_relu_kernel(x_ref, w_ref, b_ref, y_ref):
    """Fused 1x1 conv + bias + ReLU for one batch tile.

    x_ref : (Bt, C_in, H*W)        images, spatial flattened onto lanes
    w_ref : (C_out*r*r, C_in)      1x1 conv weight (resident, single-buffered)
    b_ref : (C_out*r*r, 1)         conv bias       (resident, single-buffered)
    y_ref : (Bt, C_out*r*r, H*W)   pre-shuffle conv output
    """
    w = w_ref[...].astype(jnp.float32)
    b = b_ref[...].astype(jnp.float32)
    for n in range(x_ref.shape[0]):            # static unroll over batch tile
        x = x_ref[n].astype(jnp.float32)                        # (C_in, HW)
        y = jnp.dot(w, x, preferred_element_type=jnp.float32)   # MXU
        y_ref[n] = jnp.maximum(y + b, 0.0).astype(y_ref.dtype)


def _pick_batch_tile(batch, per_image_bytes, vmem_budget=8 << 20):
    """Largest batch tile that (a) divides B, (b) leaves >= 2 grid steps when
    B >= 2 (so both v7x TensorCores get work), (c) fits a conservative VMEM
    budget for the double-buffered input/output blocks."""
    best = 1
    for bt in range(1, batch + 1):
        if batch % bt:
            continue
        if batch >= 2 and batch // bt < 2:
            continue
        if bt * per_image_bytes > vmem_budget:
            continue
        best = max(best, bt)
    return best


def pixel_shuffle_icnr(x, weight, bias, *, scale=2):
    """Forward of PixelShuffle_ICNR (blur=False): PixelShuffle(ReLU(Conv1x1(x))).

    x      : (B, C_in, H, W)
    weight : (C_out*scale**2, C_in) or (C_out*scale**2, C_in, 1, 1)
    bias   : (C_out*scale**2,)
    returns: (B, C_out, H*scale, W*scale)
    """
    B, c_in, H, W = x.shape
    r = scale
    r2 = r * r
    c_conv = weight.shape[0]
    c_out = c_conv // r2
    hw = H * W

    # Metadata-only / tiny host-side relayouts.
    x2 = x.reshape(B, c_in, hw)
    w2 = weight.reshape(c_conv, -1)          # squeeze the 1x1 kernel dims
    b2 = bias.reshape(c_conv, 1)

    itemsize = jnp.dtype(x.dtype).itemsize
    per_image = 2 * (c_in + c_conv) * hw * itemsize   # double-buffered in+out blocks
    bt = _pick_batch_tile(B, per_image)
    grid = (B // bt,)

    y = pl.pallas_call(
        _conv1x1_relu_kernel,
        out_shape=jax.ShapeDtypeStruct((B, c_conv, hw), x.dtype),
        grid_spec=pltpu.PrefetchScalarGridSpec(
            num_scalar_prefetch=0,
            grid=grid,
            in_specs=[
                pl.BlockSpec((bt, c_in, hw), lambda b: (b, 0, 0)),
                # Grid-invariant operands: fetch once, keep resident (1 buffer).
                pl.BlockSpec((c_conv, c_in), lambda b: (0, 0),
                             pipeline_mode=pl.Buffered(1)),
                pl.BlockSpec((c_conv, 1), lambda b: (0, 0),
                             pipeline_mode=pl.Buffered(1)),
            ],
            out_specs=pl.BlockSpec((bt, c_conv, hw), lambda b: (b, 0, 0)),
        ),
        compiler_params=pltpu.CompilerParams(
            dimension_semantics=("parallel",),
        ),
    )(x2, w2, b2)

    # PixelShuffle: conv channel o = c*r^2 + i*r + j  ->  out[c, h*r+i, w*r+j].
    # Single linear-cost permutation of the true output bytes (XLA transpose);
    # the final reshape merges adjacent dims and is metadata-only.
    y = y.reshape(B, c_out, r, r, H, W).transpose(0, 1, 4, 2, 5, 3)
    return y.reshape(B, c_out, H * r, W * r)


def _reference(x, weight, bias, scale):
    """Pure-JAX reference mirroring the PyTorch module (blur=False)."""
    B, c_in, H, W = x.shape
    r = scale
    c_out = weight.shape[0] // (r * r)
    y = jnp.einsum("oc,bchw->bohw", weight.reshape(weight.shape[0], -1), x)
    y = y + bias[None, :, None, None]
    y = jnp.maximum(y, 0.0)
    y = y.reshape(B, c_out, r, r, H, W).transpose(0, 1, 4, 2, 5, 3)
    return y.reshape(B, c_out, H * r, W * r)


if __name__ == "__main__":
    key = jax.random.PRNGKey(0)
    kx, kw, kb = jax.random.split(key, 3)
    B, C_IN, H, W = 2, 4, 16, 16
    C_OUT, SCALE = 4, 2

    x = jax.random.normal(kx, (B, C_IN, H, W), dtype=jnp.float32)
    weight = 0.1 * jax.random.normal(kw, (C_OUT * SCALE ** 2, C_IN), dtype=jnp.float32)
    bias = 0.1 * jax.random.normal(kb, (C_OUT * SCALE ** 2,), dtype=jnp.float32)

    out = pixel_shuffle_icnr(x, weight, bias, scale=SCALE)
    out = jax.block_until_ready(out)

    ref = _reference(x, weight, bias, SCALE)
    assert out.shape == (B, C_OUT, H * SCALE, W * SCALE), out.shape
    max_err = float(jnp.max(jnp.abs(out - ref)))
    assert jnp.allclose(out, ref, atol=1e-4, rtol=1e-4), max_err
    print("KERNEL_OK")
</pallas_src>

<mosaic_0001>
module attributes {stable_mosaic.version = 11 : i64} {
  func.func @_conv1x1_relu_kernel(%arg0: i32, %arg1: memref<1x4x256xf32, #tpu.memory_space<vmem>>, %arg2: memref<16x4xf32, #tpu.memory_space<vmem>>, %arg3: memref<16x1xf32, #tpu.memory_space<vmem>>, %arg4: memref<1x16x256xf32, #tpu.memory_space<vmem>>) attributes {dimension_semantics = [#tpu.dimension_semantics<parallel>], iteration_bounds = array<i64: 2>, scalar_prefetch = 0 : i64, scratch_operands = 0 : i64, tpu.core_type = #tpu.core_type<tc>, window_params = [{transform_indices = @transform_0, window_bounds = array<i64: 1, 4, 256>}, {pipeline_mode = #tpu.pipeline_mode<synchronous>, transform_indices = @transform_1, window_bounds = array<i64: 16, 4>}, {pipeline_mode = #tpu.pipeline_mode<synchronous>, transform_indices = @transform_2, window_bounds = array<i64: 16, 1>}, {transform_indices = @transform_3, window_bounds = array<i64: 1, 16, 256>}]} {
    %c0 = arith.constant 0 : index
    %c0_0 = arith.constant 0 : index
    %0 = vector.load %arg2[%c0, %c0_0] : memref<16x4xf32, #tpu.memory_space<vmem>>, vector<16x4xf32>
    %c0_1 = arith.constant 0 : index
    %c0_2 = arith.constant 0 : index
    %1 = vector.load %arg3[%c0_1, %c0_2] : memref<16x1xf32, #tpu.memory_space<vmem>>, vector<16x1xf32>
    %c0_3 = arith.constant 0 : index
    %c0_4 = arith.constant 0 : index
    %c0_5 = arith.constant 0 : index
    %2 = vector.load %arg1[%c0_3, %c0_4, %c0_5] : memref<1x4x256xf32, #tpu.memory_space<vmem>>, vector<1x4x256xf32>
    %3 = vector.shape_cast %2 : vector<1x4x256xf32> to vector<4x256xf32>
    %cst = arith.constant dense<0.000000e+00> : vector<16x256xf32>
    %4 = tpu.matmul %0, %3, %cst {dimension_numbers = #tpu.dot_dimension_numbers<[1], [0], [0], [1], [0, 0, 1, 1], [], []>} : vector<16x4xf32>, vector<4x256xf32>, vector<16x256xf32> -> vector<16x256xf32>
    %5 = vector.broadcast %1 : vector<16x1xf32> to vector<16x256xf32>
    %6 = arith.addf %4, %5 : vector<16x256xf32>
    %cst_6 = arith.constant 0.000000e+00 : f32
    %7 = vector.broadcast %cst_6 : f32 to vector<16x256xf32>
    %8 = arith.maximumf %6, %7 : vector<16x256xf32>
    %c0_7 = arith.constant 0 : index
    %c0_8 = arith.constant 0 : index
    %c0_9 = arith.constant 0 : index
    %9 = vector.load %arg4[%c0_7, %c0_8, %c0_9] : memref<1x16x256xf32, #tpu.memory_space<vmem>>, vector<1x16x256xf32>
    %10 = vector.shape_cast %9 : vector<1x16x256xf32> to vector<16x256xf32>
    %11 = vector.shape_cast %8 : vector<16x256xf32> to vector<1x16x256xf32>
    tpu.vector_store %arg4[%c0_7, %c0_8, %c0_9], %11 {strides = array<i32>} : memref<1x16x256xf32, #tpu.memory_space<vmem>>, vector<1x16x256xf32>,
    return
  }
  func.func @transform_0(%arg0: i32) -> (i32, i32, i32) {
    %c0_i32 = arith.constant 0 : i32
    %c0_i32_0 = arith.constant 0 : i32
    %c0_i32_1 = arith.constant 0 : i32
    return %arg0, %c0_i32, %c0_i32_0 : i32, i32, i32
  }
  func.func @transform_1(%arg0: i32) -> (i32, i32) {
    %c0_i32 = arith.constant 0 : i32
    %c0_i32_0 = arith.constant 0 : i32
    %c0_i32_1 = arith.constant 0 : i32
    return %c0_i32, %c0_i32_0 : i32, i32
  }
  func.func @transform_2(%arg0: i32) -> (i32, i32) {
    %c0_i32 = arith.constant 0 : i32
    %c0_i32_0 = arith.constant 0 : i32
    %c0_i32_1 = arith.constant 0 : i32
    return %c0_i32, %c0_i32_0 : i32, i32
  }
  func.func @transform_3(%arg0: i32) -> (i32, i32, i32) {
    %c0_i32 = arith.constant 0 : i32
    %c0_i32_0 = arith.constant 0 : i32
    %c0_i32_1 = arith.constant 0 : i32
    return %arg0, %c0_i32, %c0_i32_0 : i32, i32, i32
  }
}

</mosaic_0001>

<llo_original>
// kernel: tpu_custom_call.1
$region0: #{tpu_custom_call.1}
  #allocation0 [shape = 'u32[]', space=smem, size = 0x4, offset = 0x4, fixed_abs, tag = 'smem constant byte address 0x4 - core index']
  #allocation1 [shape = 'u32[144,128]{1,0:T(1,128)}', space=vmem, size = 0x12000, scoped, tag = 'internal scratch']
  %s0 = inlined_call_operand.vmem [shape: f32[2,4,256], index: 0, kind: input, shape index: {}]
  %s1 = inlined_call_operand.vmem [shape: f32[16,4], index: 1, kind: input, shape index: {}]
  %s2 = inlined_call_operand.vmem [shape: f32[16,1], index: 2, kind: input, shape index: {}]
  %s3 = inlined_call_operand.hbm [shape: f32[2,16,256], index: 3, kind: output, shape index: {}]
  %s4 = sld [smem:[#allocation0]]
  $region45: #{tpu_custom_call.1} parent=0
    _
  %s6 = ssub.s32 1, %s4
  %s7 = scalar_select 0, %s6, %s4
  $region1: #{tpu_custom_call.1} parent=0
    #allocation2 [shape = 'u8[32768]{0}', space=vmem, size = 0x8000, scoped, tag = 'output window, operand 0']
    #allocation3 [shape = 's32[2]{0}', space=sflag, size = 0x8, scoped, tag = 'scoped memory for tpu_custom_call.1']
    %8 = vsyncpa [#allocation3], 0
    %s9 = scalar_lea.sflag [#allocation3], 1
    %10 = vsyncpa %s9, 0
    loop: start=0, step=1, limit=4
    $region2: #{tpu_custom_call.1} parent=1 // loop_pre_header
      _
    $region3: #{tpu_custom_call.1} parent=1 // loop_header
      %s12 = sphi 0, %s16
      %p13 = scmp.ge.s32.totalorder %s12, 4
      %s22 = sphi 0, %s24
      %s25 = sphi 0, %s22
      %s26 = sphi 0, %s25
      %s42 = sphi 0, %s26
      %s46 = sphi 0, %s46
      %s48 = sphi 0, %s46
      %s49 = sphi 0, %s48
      %s63 = sphi 0, %s49
      %s67 = sphi 0, %s67
      %s69 = sphi 0, %s67
      %s70 = sphi 0, %s69
      %s84 = sphi 0, %s70
      %s90 = sphi 0, %s92
      %s93 = sphi 0, %s90
      %s94 = sphi 0, %s93
      %s110 = sphi 0, %s94
    $region4: #{tpu_custom_call.1} parent=1 // loop_header_branch
      %15 = sbr.rel (%p13) target = $region8
    $region5: #{tpu_custom_call.1} parent=1 // loop_body
      %s17 = ssub.s32 %s12, 1
      %s18 = ssub.s32 %s12, 2
      %s19 = sadd.s32 %s12, 1
      %s20 = ssub.s32 %s12, %s19
      %p21 = scmp.eq.s32.totalorder %s20, 0
      %s23 = sadd.s32 %s22, 1
      %s24 = scalar_select %p21, %s22, %s23
      %p27 = pneg %p21
      %p28 = scmp.eq.s32.totalorder %s12, 1
      %p29 = por %p27, %p28
      %p30 = scmp.ne.s32.totalorder %s22, %s25
      %p31 = scmp.eq.s32.totalorder %s12, 0
      %p32 = por %p30, %p31
      %p33 = scmp.ne.s32.totalorder %s22, %s25
      %p34 = scmp.eq.s32.totalorder %s17, 1
      %p35 = por %p33, %p34
      %p36 = scmp.ne.s32.totalorder %s25, %s26
      %p37 = scmp.eq.s32.totalorder %s17, 0
      %p38 = por %p36, %p37
      %p39 = scmp.ne.s32.totalorder %s25, %s26
      %p40 = scmp.eq.s32.totalorder %s18, 1
      %p41 = por %p39, %p40
      %p43 = scmp.ne.s32.totalorder %s26, %s42
      %p44 = scmp.eq.s32.totalorder %s18, 0
      %p45 = por %p43, %p44
      %s47 = sadd.s32 %s46, 1
      %p50 = scmp.eq.s32.totalorder %s12, 1
      %p51 = scmp.ne.s32.totalorder %s46, %s48
      %p52 = scmp.eq.s32.totalorder %s12, 0
      %p53 = por %p51, %p52
      %p54 = scmp.ne.s32.totalorder %s46, %s48
      %p55 = scmp.eq.s32.totalorder %s17, 1
      %p56 = por %p54, %p55
      %p57 = scmp.ne.s32.totalorder %s48, %s49
      %p58 = scmp.eq.s32.totalorder %s17, 0
      %p59 = por %p57, %p58
      %p60 = scmp.ne.s32.totalorder %s48, %s49
      %p61 = scmp.eq.s32.totalorder %s18, 1
      %p62 = por %p60, %p61
      %p64 = scmp.ne.s32.totalorder %s49, %s63
      %p65 = scmp.eq.s32.totalorder %s18, 0
      %p66 = por %p64, %p65
      %s68 = sadd.s32 %s67, 1
      %p71 = scmp.eq.s32.totalorder %s12, 1
      %p72 = scmp.ne.s32.totalorder %s67, %s69
      %p73 = scmp.eq.s32.totalorder %s12, 0
      %p74 = por %p72, %p73
      %p75 = scmp.ne.s32.totalorder %s67, %s69
      %p76 = scmp.eq.s32.totalorder %s17, 1
      %p77 = por %p75, %p76
      %p78 = scmp.ne.s32.totalorder %s69, %s70
      %p79 = scmp.eq.s32.totalorder %s17, 0
      %p80 = por %p78, %p79
      %p81 = scmp.ne.s32.totalorder %s69, %s70
      %p82 = scmp.eq.s32.totalorder %s18, 1
      %p83 = por %p81, %p82
      %p85 = scmp.ne.s32.totalorder %s70, %s84
      %p86 = scmp.eq.s32.totalorder %s18, 0
      %p87 = por %p85, %p86
      %s88 = ssub.s32 %s12, %s19
      %p89 = scmp.eq.s32.totalorder %s88, 0
      %s91 = sadd.s32 %s90, 1
      %s92 = scalar_select %p89, %s90, %s91
      %p95 = pneg %p89
      %p96 = scmp.eq.s32.totalorder %s12, 1
      %p97 = por %p95, %p96
      %p98 = scmp.ne.s32.totalorder %s90, %s93
      %p99 = scmp.eq.s32.totalorder %s12, 0
      %p100 = por %p98, %p99
      %p101 = scmp.ne.s32.totalorder %s90, %s93
      %p102 = scmp.eq.s32.totalorder %s17, 1
      %p103 = por %p101, %p102
      %p104 = scmp.ne.s32.totalorder %s93, %s94
      %p105 = scmp.eq.s32.totalorder %s17, 0
      %p106 = por %p104, %p105
      %p107 = scmp.ne.s32.totalorder %s93, %s94
      %p108 = scmp.eq.s32.totalorder %s18, 1
      %p109 = por %p107, %p108
      %p111 = scmp.ne.s32.totalorder %s94, %s110
      %p112 = scmp.eq.s32.totalorder %s18, 0
      %p113 = por %p111, %p112
      %p114 = scmp.le.s32.totalorder 1, %s12
      %p115 = scmp.lt.s32.totalorder %s12, 3
      %p116 = pnand %p114, %p115
      %p117 = pneg %p116
      // Predicated region
      $region9: #{tpu_custom_call.1} parent=5 // pred_check
        _
      $region10: #{tpu_custom_call.1} parent=5 // pred_check_branch
        %119 = sbr.rel (%p116) target = $region12
      $region11: #{tpu_custom_call.1} parent=5 // pred_region
        %s120 = ssub.s32 %s12, 1
        // Predicated region
        $region13: #{tpu_custom_call.1} parent=11 // pred_check
          %p121 = pneg %p59
        $region14: #{tpu_custom_call.1} parent=11 // pred_check_branch
          %123 = sbr.rel (%p121) target = $region16
        $region15: #{tpu_custom_call.1} parent=11 // pred_region
          _
        $region16: #{tpu_custom_call.1} parent=11 // pred_fallthru
          _
        // Predicated region
        $region17: #{tpu_custom_call.1} parent=11 // pred_check
          %p124 = pneg %p80
        $region18: #{tpu_custom_call.1} parent=11 // pred_check_branch
          %126 = sbr.rel (%p124) target = $region20
        $region19: #{tpu_custom_call.1} parent=11 // pred_region
          _
        $region20: #{tpu_custom_call.1} parent=11 // pred_fallthru
          _
      $region12: #{tpu_custom_call.1} parent=5 // pred_fallthru
        _
      %p127 = scmp.lt.s32.totalorder %s12, 2
      // Predicated region
      $region21: #{tpu_custom_call.1} parent=5 // pred_check
        %p128 = pneg %p127
      $region22: #{tpu_custom_call.1} parent=5 // pred_check_branch
        %130 = sbr.rel (%p128) target = $region24
      $region23: #{tpu_custom_call.1} parent=5 // pred_region
        // Predicated region
        $region25: #{tpu_custom_call.1} parent=23 // pred_check
          %p131 = pneg %p32
        $region26: #{tpu_custom_call.1} parent=23 // pred_check_branch
          %133 = sbr.rel (%p131) target = $region28
        $region27: #{tpu_custom_call.1} parent=23 // pred_region
          %p134 = scmp.lt.s32.totalorder %s12, 1
          %s135 = scalar_select %p134, %s12, 1
          %s136 = smul.addr %s135, 2
          %s137 = smul.addr %s136, 4
          %s138 = scalar_lea.vmem %s0, %s137
        $region28: #{tpu_custom_call.1} parent=23 // pred_fallthru
          _
      $region24: #{tpu_custom_call.1} parent=5 // pred_fallthru
        _
      %p139 = scmp.le.s32.totalorder 1, %s12
      %p140 = scmp.lt.s32.totalorder %s12, 3
      %p141 = pnand %p139, %p140
      %p142 = pneg %p141
      // Predicated region
      $region29: #{tpu_custom_call.1} parent=5 // pred_check
        _
      $region30: #{tpu_custom_call.1} parent=5 // pred_check_branch
        %144 = sbr.rel (%p141) target = $region32
      $region31: #{tpu_custom_call.1} parent=5 // pred_region
        %s145 = ssub.s32 %s12, 1
        %p146 = scmp.lt.s32.totalorder %s17, 1
        %s147 = scalar_select %p146, %s17, 1
        %s148 = smul.addr %s147, 2
        %s149 = smul.addr %s148, 4
        %s150 = scalar_lea.vmem %s0, %s149
        %p151 = pneg %p38
        %p152 = pneg %p35
        %p153 = pneg %p59
        %p154 = pneg %p56
        %p155 = pneg %p80
        %p156 = pneg %p77
        %p157 = pneg %p106
        %p158 = pneg %p103
        %s159 = sand.u32 %s93, 1
        %s160 = scalar_lea.sflag [#allocation3], %s159
        %s161 = sand.u32 %s93, 1
        %s162 = smul.addr %s161, 32
        %s163 = scalar_lea.vmem [#allocation2], %s162
        %p164 = scmp.lt.s32.totalorder %s17, 1
        %s165 = scalar_select %p164, %s17, 1
        %s166 = smul.addr %s165, 2
        %s167 = smul.addr %s166, 4
        %s168 = scalar_lea.vmem %s0, %s167
        %v169 = vld [vmem:[%s1] sm:$0xff]
        %v170 = vld [vmem:[%s1 + $0x8] sm:$0xff]
        %v171 = vld [vmem:[%s2] sm:$0xff]
        %v172 = vld [vmem:[%s2 + $0x8] sm:$0xff]
        %v173 = vld [vmem:[%s168] sm:$0xff]
        %175 = vset.pattern.permute.xlu0 0
        %176 = vperm.xlu0 %175, %v171
        %v177 = vpop.permute.xlu0 %176
        %180 = vset.pattern.permute.xlu0 0
        %181 = vperm.xlu0 %180, %v172
        %v182 = vpop.permute.xlu0 %181
        %v185 = vcombine.high %v173, %v173
        %vm186 = vcmask 31744
        %v188 = vsel %vm186, %v169, 0
        %v191 = vsel %vm186, %v170, 0
        %vm193 = vcmask 1043456
        %v194 = vsel %vm193, %v173, 0
        %v196 = vsel %vm193, %v185, 0
        %198 = vmatprep.subr.mxu0 %v196
        %199 = vmatpush1.msra.mxu0 %v194
        %200 = vmatprep.subr.mxu0 0.0
        %201 = vmatpush1.msra.mxu0 0.0
        %202 = vmatprep.subr.mxu0 0.0
        %203 = vmatpush1.msra.mxu0 0.0
        %204 = vmatprep.subr.mxu0 0.0
        %205 = vmatpush1.msra.mxu0 0.0
        %206 = vmatprep.subr.mxu0 0.0
        %207 = vmatpush1.msra.mxu0 0.0
        %208 = vmatprep.subr.mxu0 0.0
        %209 = vmatpush1.msra.mxu0 0.0
        %210 = vmatprep.subr.mxu0 0.0
        %211 = vmatpush1.msra.mxu0 0.0
        %212 = vmatprep.subr.mxu0 0.0
        %213 = vmatpush1.msra.mxu0 0.0
        %214 = vmatprep.subr.mxu0 0.0
        %215 = vmatpush1.msra.mxu0 0.0
        %216 = vmatprep.subr.mxu0 0.0
        %217 = vmatpush1.msra.mxu0 0.0
        %218 = vmatprep.subr.mxu0 0.0
        %219 = vmatpush1.msra.mxu0 0.0
        %220 = vmatprep.subr.mxu0 0.0
        %221 = vmatpush1.msra.mxu0 0.0
        %222 = vmatprep.subr.mxu0 0.0
        %223 = vmatpush1.msra.mxu0 0.0
        %224 = vmatprep.subr.mxu0 0.0
        %225 = vmatpush1.msra.mxu0 0.0
        %226 = vmatprep.subr.mxu0 0.0
        %227 = vmatpush1.msra.mxu0 0.0
        %228 = vmatprep.subr.mxu0 0.0
        %229 = vmatpush1.msra.mxu0 0.0
        %230 = vmatprep.subr.mxu0 0.0
        %231 = vmatpush1.msra.mxu0 0.0
        %232 = vmatprep.subr.mxu0 0.0
        %233 = vmatpush1.msra.mxu0 0.0
        %234 = vmatprep.subr.mxu0 0.0
        %235 = vmatpush1.msra.mxu0 0.0
        %236 = vmatprep.subr.mxu0 0.0
        %237 = vmatpush1.msra.mxu0 0.0
        %238 = vmatprep.subr.mxu0 0.0
        %239 = vmatpush1.msra.mxu0 0.0
        %240 = vmatprep.subr.mxu0 0.0
        %241 = vmatpush1.msra.mxu0 0.0
        %242 = vmatprep.subr.mxu0 0.0
        %243 = vmatpush1.msra.mxu0 0.0
        %244 = vmatprep.subr.mxu0 0.0
        %245 = vmatpush1.msra.mxu0 0.0
        %246 = vmatprep.subr.mxu0 0.0
        %247 = vmatpush1.msra.mxu0 0.0
        %248 = vmatprep.subr.mxu0 0.0
        %249 = vmatpush1.msra.mxu0 0.0
        %250 = vmatprep.subr.mxu0 0.0
        %251 = vmatpush1.msra.mxu0 0.0
        %252 = vmatprep.subr.mxu0 0.0
        %253 = vmatpush1.msra.mxu0 0.0
        %254 = vmatprep.subr.mxu0 0.0
        %255 = vmatpush1.msra.mxu0 0.0
        %256 = vmatprep.subr.mxu0 0.0
        %257 = vmatpush1.msra.mxu0 0.0
        %258 = vmatprep.subr.mxu0 0.0
        %259 = vmatpush1.msra.mxu0 0.0
        %260 = vmatprep.subr.mxu0 0.0
        %261 = vmatpush1.msra.mxu0 0.0
        %262 = vmatprep.mubr.f32.mxu0 0.0
        %263 = vmatmul.mubr.f32.gmra.mrb[0].mxu0 %v188
        %v264 = vpop.f32.mrb[0].mxu0
        %v265 = vadd.f32 %v177, %v264
        %v266 = vpop.f32.mrb[0].mxu0
        %v267 = vadd.f32 %v177, %v266
        %268 = vmatprep.mubr.f32.mxu0 0.0
        %269 = vmatmul.mubr.f32.gmra.mrb[0].mxu0 %v191
        %v270 = vpop.f32.mrb[0].mxu0
        %v271 = vadd.f32 %v182, %v270
        %v272 = vpop.f32.mrb[0].mxu0
        %v273 = vadd.f32 %v182, %v272
        %274 = vdwg.mxu0
        %v275 = vmax.f32 %v265, 0.0
        %v276 = vmax.f32 %v267, 0.0
        %v277 = vmax.f32 %v271, 0.0
        %v278 = vmax.f32 %v273, 0.0
        %279 = vst [vmem:[%s163] sm:$0xff] %v275
        %280 = vst [vmem:[%s163 + $0x8] sm:$0xff] %v276
        %281 = vst [vmem:[%s163 + $0x10] sm:$0xff] %v277
        %282 = vst [vmem:[%s163 + $0x18] sm:$0xff] %v278
        %s283 = sand.u32 %s93, 1
        %s284 = scalar_lea.sflag [#allocation3], %s283
        %s285 = sand.u32 %s93, 1
        %s286 = smul.addr %s285, 32
        %s287 = scalar_lea.vmem [#allocation2], %s286
        // Predicated region
        $region33: #{tpu_custom_call.1} parent=31 // pred_check
          %p288 = pneg %p103
        $region34: #{tpu_custom_call.1} parent=31 // pred_check_branch
          %290 = sbr.rel (%p288) target = $region36
        $region35: #{tpu_custom_call.1} parent=31 // pred_region
          %s292 = ssub.s32 512, 512
          %293 = vsyncadd %s284, %s292
          %s294 = smul.addr %s17, 4
          %s295 = smul.addr %s294, 128
          %s296 = scalar_lea.hbm %s3, %s295
          %s297 = sshll.u32 %s287, 4
          %s298 = int_to_ptr.vmem [resolvable:$true] %s297
          %303 = dma.vmem_to_hbm [thread:$0]  %s298, 512, %s296, %s284, 256, 256, 16
        $region36: #{tpu_custom_call.1} parent=31 // pred_fallthru
          _
      $region32: #{tpu_custom_call.1} parent=5 // pred_fallthru
        _
      %p304 = scmp.le.s32.totalorder 2, %s12
      // Predicated region
      $region37: #{tpu_custom_call.1} parent=5 // pred_check
        %p305 = pneg %p304
      $region38: #{tpu_custom_call.1} parent=5 // pred_check_branch
        %307 = sbr.rel (%p305) target = $region40
      $region39: #{tpu_custom_call.1} parent=5 // pred_region
        %s308 = ssub.s32 %s12, 2
        // Predicated region
        $region41: #{tpu_custom_call.1} parent=39 // pred_check
          %p309 = pneg %p109
        $region42: #{tpu_custom_call.1} parent=39 // pred_check_branch
          %311 = sbr.rel (%p309) target = $region44
        $region43: #{tpu_custom_call.1} parent=39 // pred_region
          %s312 = sand.u32 %s94, 1
          %s313 = scalar_lea.sflag [#allocation3], %s312
          %s314 = sand.u32 %s94, 1
          %s315 = smul.addr %s314, 32
          %s316 = scalar_lea.vmem [#allocation2], %s315
          %317 = dma.done %s313, 512
        $region44: #{tpu_custom_call.1} parent=39 // pred_fallthru
          _
      $region40: #{tpu_custom_call.1} parent=5 // pred_fallthru
        _
    $region6: #{tpu_custom_call.1} parent=1 // loop_footer
      %s16 = sadd.s32 1, %s12
    $region7: #{tpu_custom_call.1} parent=1 // loop_footer_branch
      %11 = sbr.rel target = $region3
    $region8: #{tpu_custom_call.1} parent=1 // loop_exit
      _
    %318 = vsyncpa [#allocation3], 1
    %s319 = scalar_lea.sflag [#allocation3], 1
    %320 = vsyncpa %s319, 1

</llo_original>
